<compile_context>
chip_gen: v6e
topology: v6e:2x2x1
jax: 0.10.0
libtpu: 0.0.40
codegen_flags: <defaults>
</compile_context>

<pallas_src>
import functools

import jax
import jax.numpy as jnp
from jax.experimental import pallas as pl
from jax.experimental.pallas import tpu as pltpu

_EPS = 1e-5  # GroupNorm eps (PyTorch default)


def _erf(x):
    """Abramowitz & Stegun 7.1.26 polynomial erf (max abs error ~1.5e-7)."""
    a1, a2, a3, a4, a5 = 0.254829592, -0.284496736, 1.421413741, -1.453152027, 1.061405429
    p = 0.3275911
    ax = jnp.abs(x)
    t = 1.0 / (1.0 + p * ax)
    poly = ((((a5 * t + a4) * t + a3) * t + a2) * t + a1) * t
    y = 1.0 - poly * jnp.exp(-ax * ax)
    return jnp.where(x >= 0, y, -y)


def _gelu(x):
    # Exact (erf-based) GELU, matching torch.nn.GELU() / F.gelu defaults.
    return 0.5 * x * (1.0 + _erf(x * 0.7071067811865476))


def double_conv_kernel(x_ref, w1_ref, g1_ref, b1_ref, w2_ref, g2_ref, b2_ref,
                       o_ref, *, residual):
    # x_ref : (B, C_in, L)
    # w1_ref: (C_mid, 3*C_in)   -- k-tap-major flattened Conv1d weight
    # g1_ref, b1_ref: (C_mid, 1)
    # w2_ref: (C_out, 3*C_mid)
    # g2_ref, b2_ref: (C_out, 1)
    # o_ref : (B, C_out, L)
    B, _, L = x_ref.shape

    def stack_taps(t):
        # (C, L) -> (3*C, L): rows [k*C:(k+1)*C] hold x shifted by (k-1) with
        # zero padding, so Conv1d(k=3, pad=1) becomes a single matmul.
        z = jnp.zeros((t.shape[0], 1), dtype=t.dtype)
        tp = jnp.concatenate([z, t, z], axis=1)            # (C, L+2)
        return jnp.concatenate(
            [tp[:, 0:L], tp[:, 1:L + 1], tp[:, 2:L + 2]], axis=0)

    def group_norm(t, gamma, beta):
        # GroupNorm(num_groups=1): normalize over all (C, L) of one sample.
        mean = jnp.mean(t)
        var = jnp.mean(jnp.square(t - mean))               # biased, as in torch
        tn = (t - mean) * jax.lax.rsqrt(var + _EPS)        # rsqrt -> EUP
        return tn * gamma + beta                           # per-channel affine

    # ---- conv1: one MXU matmul covering every batch element -----------------
    xs = jnp.concatenate([stack_taps(x_ref[b]) for b in range(B)],
                         axis=1)                           # (3*C_in, B*L)
    h = jnp.dot(w1_ref[...], xs,
                preferred_element_type=jnp.float32)        # (C_mid, B*L)

    # ---- GroupNorm(1) + GELU, per sample ------------------------------------
    h_per_b = []
    for b in range(B):
        hb = group_norm(h[:, b * L:(b + 1) * L], g1_ref[...], b1_ref[...])
        h_per_b.append(_gelu(hb))

    # ---- conv2: again a single MXU matmul ------------------------------------
    hs = jnp.concatenate([stack_taps(hb) for hb in h_per_b],
                         axis=1)                           # (3*C_mid, B*L)
    y = jnp.dot(w2_ref[...], hs,
                preferred_element_type=jnp.float32)        # (C_out, B*L)

    # ---- GroupNorm(1) (+ optional residual GELU) and lane-dense store -------
    for b in range(B):
        yb = group_norm(y[:, b * L:(b + 1) * L], g2_ref[...], b2_ref[...])
        if residual:
            yb = _gelu(x_ref[b] + yb)                      # requires C_in == C_out
        o_ref[b] = yb.astype(o_ref.dtype)


@functools.partial(jax.jit, static_argnames=("residual",))
def double_conv_pallas(x, w1, g1, b1, w2, g2, b2, residual=False):
    """x: (B, C_in, L); w1: (C_mid, C_in, 3); w2: (C_out, C_mid, 3);
    g*/b*: per-channel GroupNorm affine params (C,)."""
    B, C_in, L = x.shape
    C_mid = w1.shape[0]
    C_out = w2.shape[0]

    # Host-side layout plumbing (no in-kernel transposes):
    # torch Conv1d weight (O, I, K) -> (O, K*I) with tap-major columns.
    w1_flat = jnp.transpose(w1, (0, 2, 1)).reshape(C_mid, 3 * C_in)
    w2_flat = jnp.transpose(w2, (0, 2, 1)).reshape(C_out, 3 * C_mid)
    g1c = g1.reshape(C_mid, 1)
    b1c = b1.reshape(C_mid, 1)
    g2c = g2.reshape(C_out, 1)
    b2c = b2.reshape(C_out, 1)

    vmem = lambda: pl.BlockSpec(memory_space=pltpu.MemorySpace.VMEM)
    return pl.pallas_call(
        functools.partial(double_conv_kernel, residual=residual),
        out_shape=jax.ShapeDtypeStruct((B, C_out, L), x.dtype),
        # Grid-free: the whole problem fits in VMEM on v5e/v6e/v7x, so a single
        # invocation avoids all per-step pipeline overhead.
        in_specs=[vmem() for _ in range(7)],
        out_specs=vmem(),
    )(x, w1_flat, g1c, b1c, w2_flat, g2c, b2c)


# --------------------------- pure-JAX reference ------------------------------
def double_conv_reference(x, w1, g1, b1, w2, g2, b2, residual=False):
    def conv1d(t, w):
        return jax.lax.conv_general_dilated(
            t, w, window_strides=(1,), padding=((1, 1),),
            dimension_numbers=("NCH", "OIH", "NCH"))

    def group_norm1(t, g, b):
        mean = t.mean(axis=(1, 2), keepdims=True)
        var = jnp.square(t - mean).mean(axis=(1, 2), keepdims=True)
        tn = (t - mean) * jax.lax.rsqrt(var + _EPS)
        return tn * g[None, :, None] + b[None, :, None]

    h = conv1d(x, w1)
    h = group_norm1(h, g1, b1)
    h = jax.nn.gelu(h, approximate=False)        # exact erf GELU (torch default)
    h = conv1d(h, w2)
    h = group_norm1(h, g2, b2)
    if residual:
        return jax.nn.gelu(x + h, approximate=False)
    return h


if __name__ == "__main__":
    # Small shapes consistent with the module; L=128 keeps stores lane-dense.
    B, C_IN, C_MID, C_OUT, L = 2, 16, 32, 16, 128

    key = jax.random.PRNGKey(0)
    ks = jax.random.split(key, 7)
    x = jax.random.normal(ks[0], (B, C_IN, L), dtype=jnp.float32)
    w1 = jax.random.normal(ks[1], (C_MID, C_IN, 3), dtype=jnp.float32) * 0.1
    g1 = 1.0 + 0.1 * jax.random.normal(ks[2], (C_MID,), dtype=jnp.float32)
    b1 = 0.1 * jax.random.normal(ks[3], (C_MID,), dtype=jnp.float32)
    w2 = jax.random.normal(ks[4], (C_OUT, C_MID, 3), dtype=jnp.float32) * 0.1
    g2 = 1.0 + 0.1 * jax.random.normal(ks[5], (C_OUT,), dtype=jnp.float32)
    b2 = 0.1 * jax.random.normal(ks[6], (C_OUT,), dtype=jnp.float32)

    # Non-residual path (DoubleConv(..., residual=False), the default).
    y = double_conv_pallas(x, w1, g1, b1, w2, g2, b2, residual=False)
    jax.block_until_ready(y)
    y_ref = double_conv_reference(x, w1, g1, b1, w2, g2, b2, residual=False)
    assert y.shape == (B, C_OUT, L)
    assert jnp.allclose(y, y_ref, atol=1e-4, rtol=1e-4), "mismatch (residual=False)"

    # Residual path (requires in_channels == out_channels, as in the module).
    yr = double_conv_pallas(x, w1, g1, b1, w2, g2, b2, residual=True)
    jax.block_until_ready(yr)
    yr_ref = double_conv_reference(x, w1, g1, b1, w2, g2, b2, residual=True)
    assert jnp.allclose(yr, yr_ref, atol=1e-4, rtol=1e-4), "mismatch (residual=True)"

    print("KERNEL_OK")
</pallas_src>

<mosaic_0001>
module attributes {stable_mosaic.version = 11 : i64} {
  func.func @double_conv_kernel(%arg0: memref<2x16x128xf32, #tpu.memory_space<vmem>>, %arg1: memref<32x48xf32, #tpu.memory_space<vmem>>, %arg2: memref<32x1xf32, #tpu.memory_space<vmem>>, %arg3: memref<32x1xf32, #tpu.memory_space<vmem>>, %arg4: memref<16x96xf32, #tpu.memory_space<vmem>>, %arg5: memref<16x1xf32, #tpu.memory_space<vmem>>, %arg6: memref<16x1xf32, #tpu.memory_space<vmem>>, %arg7: memref<2x16x128xf32, #tpu.memory_space<vmem>>) attributes {dimension_semantics = [], scalar_prefetch = 0 : i64, scratch_operands = 0 : i64, tpu.core_type = #tpu.core_type<tc>} {
    %c0 = arith.constant 0 : index
    %c0_0 = arith.constant 0 : index
    %c0_1 = arith.constant 0 : index
    %0 = vector.load %arg0[%c0, %c0_0, %c0_1] : memref<2x16x128xf32, #tpu.memory_space<vmem>>, vector<1x16x128xf32>
    %1 = vector.shape_cast %0 : vector<1x16x128xf32> to vector<16x128xf32>
    %cst = arith.constant 0.000000e+00 : f32
    %2 = vector.broadcast %cst : f32 to vector<16x1xf32>
    %3 = tpu.concatenate %2, %1, %2 in 1 : vector<16x1xf32>, vector<16x128xf32>, vector<16x1xf32> -> vector<16x130xf32>
    %4 = vector.extract_strided_slice %3 {offsets = [0, 0], sizes = [16, 128], strides = [1, 1]} : vector<16x130xf32> to vector<16x128xf32>
    %5 = vector.extract_strided_slice %3 {offsets = [0, 1], sizes = [16, 128], strides = [1, 1]} : vector<16x130xf32> to vector<16x128xf32>
    %6 = vector.extract_strided_slice %3 {offsets = [0, 2], sizes = [16, 128], strides = [1, 1]} : vector<16x130xf32> to vector<16x128xf32>
    %7 = tpu.concatenate %4, %5, %6 in 0 : vector<16x128xf32>, vector<16x128xf32>, vector<16x128xf32> -> vector<48x128xf32>
    %c1 = arith.constant 1 : index
    %c0_2 = arith.constant 0 : index
    %c0_3 = arith.constant 0 : index
    %8 = vector.load %arg0[%c1, %c0_2, %c0_3] : memref<2x16x128xf32, #tpu.memory_space<vmem>>, vector<1x16x128xf32>
    %9 = vector.shape_cast %8 : vector<1x16x128xf32> to vector<16x128xf32>
    %cst_4 = arith.constant 0.000000e+00 : f32
    %10 = vector.broadcast %cst_4 : f32 to vector<16x1xf32>
    %11 = tpu.concatenate %10, %9, %10 in 1 : vector<16x1xf32>, vector<16x128xf32>, vector<16x1xf32> -> vector<16x130xf32>
    %12 = vector.extract_strided_slice %11 {offsets = [0, 0], sizes = [16, 128], strides = [1, 1]} : vector<16x130xf32> to vector<16x128xf32>
    %13 = vector.extract_strided_slice %11 {offsets = [0, 1], sizes = [16, 128], strides = [1, 1]} : vector<16x130xf32> to vector<16x128xf32>
    %14 = vector.extract_strided_slice %11 {offsets = [0, 2], sizes = [16, 128], strides = [1, 1]} : vector<16x130xf32> to vector<16x128xf32>
    %15 = tpu.concatenate %12, %13, %14 in 0 : vector<16x128xf32>, vector<16x128xf32>, vector<16x128xf32> -> vector<48x128xf32>
    %16 = tpu.concatenate %7, %15 in 1 : vector<48x128xf32>, vector<48x128xf32> -> vector<48x256xf32>
    %c0_5 = arith.constant 0 : index
    %c0_6 = arith.constant 0 : index
    %17 = vector.load %arg1[%c0_5, %c0_6] : memref<32x48xf32, #tpu.memory_space<vmem>>, vector<32x48xf32>
    %cst_7 = arith.constant dense<0.000000e+00> : vector<32x256xf32>
    %18 = tpu.matmul %17, %16, %cst_7 {dimension_numbers = #tpu.dot_dimension_numbers<[1], [0], [0], [1], [0, 0, 1, 1], [], []>} : vector<32x48xf32>, vector<48x256xf32>, vector<32x256xf32> -> vector<32x256xf32>
    %19 = vector.extract_strided_slice %18 {offsets = [0, 0], sizes = [32, 128], strides = [1, 1]} : vector<32x256xf32> to vector<32x128xf32>
    %c0_8 = arith.constant 0 : index
    %c0_9 = arith.constant 0 : index
    %20 = vector.load %arg2[%c0_8, %c0_9] : memref<32x1xf32, #tpu.memory_space<vmem>>, vector<32x1xf32>
    %c0_10 = arith.constant 0 : index
    %c0_11 = arith.constant 0 : index
    %21 = vector.load %arg3[%c0_10, %c0_11] : memref<32x1xf32, #tpu.memory_space<vmem>>, vector<32x1xf32>
    %22 = vector.shape_cast %19 : vector<32x128xf32> to vector<1x32x128xf32>
    %cst_12 = arith.constant dense<0.000000e+00> : vector<1xf32>
    %23 = vector.multi_reduction <add>, %22, %cst_12 [1, 2] : vector<1x32x128xf32> to vector<1xf32>
    %24 = vector.shape_cast %23 : vector<1xf32> to vector<1x1x1xf32>
    %25 = vector.extract %24[0, 0, 0] : f32 from vector<1x1x1xf32>
    %cst_13 = arith.constant 4.096000e+03 : f32
    %26 = arith.divf %25, %cst_13 : f32
    %27 = vector.broadcast %26 : f32 to vector<32x128xf32>
    %28 = arith.subf %19, %27 : vector<32x128xf32>
    %29 = arith.mulf %28, %28 : vector<32x128xf32>
    %30 = vector.shape_cast %29 : vector<32x128xf32> to vector<1x32x128xf32>
    %cst_14 = arith.constant dense<0.000000e+00> : vector<1xf32>
    %31 = vector.multi_reduction <add>, %30, %cst_14 [1, 2] : vector<1x32x128xf32> to vector<1xf32>
    %32 = vector.shape_cast %31 : vector<1xf32> to vector<1x1x1xf32>
    %33 = vector.extract %32[0, 0, 0] : f32 from vector<1x1x1xf32>
    %cst_15 = arith.constant 4.096000e+03 : f32
    %34 = arith.divf %33, %cst_15 : f32
    %35 = vector.broadcast %26 : f32 to vector<32x128xf32>
    %36 = arith.subf %19, %35 : vector<32x128xf32>
    %cst_16 = arith.constant 9.99999974E-6 : f32
    %37 = arith.addf %34, %cst_16 : f32
    %38 = math.rsqrt %37 : f32
    %39 = vector.broadcast %38 : f32 to vector<32x128xf32>
    %40 = arith.mulf %36, %39 : vector<32x128xf32>
    %41 = vector.broadcast %20 : vector<32x1xf32> to vector<32x128xf32>
    %42 = arith.mulf %40, %41 : vector<32x128xf32>
    %43 = vector.broadcast %21 : vector<32x1xf32> to vector<32x128xf32>
    %44 = arith.addf %42, %43 : vector<32x128xf32>
    %cst_17 = arith.constant 5.000000e-01 : f32
    %45 = vector.broadcast %cst_17 : f32 to vector<32x128xf32>
    %46 = arith.mulf %45, %44 : vector<32x128xf32>
    %cst_18 = arith.constant 0.707106769 : f32
    %47 = vector.broadcast %cst_18 : f32 to vector<32x128xf32>
    %48 = arith.mulf %44, %47 : vector<32x128xf32>
    %49 = math.absf %48 : vector<32x128xf32>
    %cst_19 = arith.constant 0.327591091 : f32
    %50 = vector.broadcast %cst_19 : f32 to vector<32x128xf32>
    %51 = arith.mulf %50, %49 : vector<32x128xf32>
    %cst_20 = arith.constant 1.000000e+00 : f32
    %52 = vector.broadcast %cst_20 : f32 to vector<32x128xf32>
    %53 = arith.addf %52, %51 : vector<32x128xf32>
    %cst_21 = arith.constant 1.000000e+00 : f32
    %54 = vector.broadcast %cst_21 : f32 to vector<32x128xf32>
    %55 = arith.divf %54, %53 : vector<32x128xf32>
    %cst_22 = arith.constant 1.06140542 : f32
    %56 = vector.broadcast %cst_22 : f32 to vector<32x128xf32>
    %57 = arith.mulf %56, %55 : vector<32x128xf32>
    %cst_23 = arith.constant -1.45315206 : f32
    %58 = vector.broadcast %cst_23 : f32 to vector<32x128xf32>
    %59 = arith.addf %57, %58 : vector<32x128xf32>
    %60 = arith.mulf %59, %55 : vector<32x128xf32>
    %cst_24 = arith.constant 1.42141378 : f32
    %61 = vector.broadcast %cst_24 : f32 to vector<32x128xf32>
    %62 = arith.addf %60, %61 : vector<32x128xf32>
    %63 = arith.mulf %62, %55 : vector<32x128xf32>
    %cst_25 = arith.constant -0.284496725 : f32
    %64 = vector.broadcast %cst_25 : f32 to vector<32x128xf32>
    %65 = arith.addf %63, %64 : vector<32x128xf32>
    %66 = arith.mulf %65, %55 : vector<32x128xf32>
    %cst_26 = arith.constant 0.254829586 : f32
    %67 = vector.broadcast %cst_26 : f32 to vector<32x128xf32>
    %68 = arith.addf %66, %67 : vector<32x128xf32>
    %69 = arith.mulf %68, %55 : vector<32x128xf32>
    %cst_27 = arith.constant 0.000000e+00 : f32
    %70 = vector.broadcast %cst_27 : f32 to vector<32x128xf32>
    %71 = arith.subf %70, %49 : vector<32x128xf32>
    %72 = arith.mulf %71, %49 : vector<32x128xf32>
    %73 = math.exp %72 : vector<32x128xf32>
    %74 = arith.mulf %69, %73 : vector<32x128xf32>
    %cst_28 = arith.constant 1.000000e+00 : f32
    %75 = vector.broadcast %cst_28 : f32 to vector<32x128xf32>
    %76 = arith.subf %75, %74 : vector<32x128xf32>
    %cst_29 = arith.constant 0.000000e+00 : f32
    %77 = vector.broadcast %cst_29 : f32 to vector<32x128xf32>
    %78 = arith.cmpf oge, %48, %77 : vector<32x128xf32>
    %cst_30 = arith.constant 0.000000e+00 : f32
    %79 = vector.broadcast %cst_30 : f32 to vector<32x128xf32>
    %80 = arith.subf %79, %76 : vector<32x128xf32>
    %81 = arith.select %78, %76, %80 : vector<32x128xi1>, vector<32x128xf32>
    %cst_31 = arith.constant 1.000000e+00 : f32
    %82 = vector.broadcast %cst_31 : f32 to vector<32x128xf32>
    %83 = arith.addf %82, %81 : vector<32x128xf32>
    %84 = arith.mulf %46, %83 : vector<32x128xf32>
    %85 = vector.extract_strided_slice %18 {offsets = [0, 128], sizes = [32, 128], strides = [1, 1]} : vector<32x256xf32> to vector<32x128xf32>
    %c0_32 = arith.constant 0 : index
    %c0_33 = arith.constant 0 : index
    %86 = vector.load %arg2[%c0_32, %c0_33] : memref<32x1xf32, #tpu.memory_space<vmem>>, vector<32x1xf32>
    %c0_34 = arith.constant 0 : index
    %c0_35 = arith.constant 0 : index
    %87 = vector.load %arg3[%c0_34, %c0_35] : memref<32x1xf32, #tpu.memory_space<vmem>>, vector<32x1xf32>
    %88 = vector.shape_cast %85 : vector<32x128xf32> to vector<1x32x128xf32>
    %cst_36 = arith.constant dense<0.000000e+00> : vector<1xf32>
    %89 = vector.multi_reduction <add>, %88, %cst_36 [1, 2] : vector<1x32x128xf32> to vector<1xf32>
    %90 = vector.shape_cast %89 : vector<1xf32> to vector<1x1x1xf32>
    %91 = vector.extract %90[0, 0, 0] : f32 from vector<1x1x1xf32>
    %cst_37 = arith.constant 4.096000e+03 : f32
    %92 = arith.divf %91, %cst_37 : f32
    %93 = vector.broadcast %92 : f32 to vector<32x128xf32>
    %94 = arith.subf %85, %93 : vector<32x128xf32>
    %95 = arith.mulf %94, %94 : vector<32x128xf32>
    %96 = vector.shape_cast %95 : vector<32x128xf32> to vector<1x32x128xf32>
    %cst_38 = arith.constant dense<0.000000e+00> : vector<1xf32>
    %97 = vector.multi_reduction <add>, %96, %cst_38 [1, 2] : vector<1x32x128xf32> to vector<1xf32>
    %98 = vector.shape_cast %97 : vector<1xf32> to vector<1x1x1xf32>
    %99 = vector.extract %98[0, 0, 0] : f32 from vector<1x1x1xf32>
    %cst_39 = arith.constant 4.096000e+03 : f32
    %100 = arith.divf %99, %cst_39 : f32
    %101 = vector.broadcast %92 : f32 to vector<32x128xf32>
    %102 = arith.subf %85, %101 : vector<32x128xf32>
    %cst_40 = arith.constant 9.99999974E-6 : f32
    %103 = arith.addf %100, %cst_40 : f32
    %104 = math.rsqrt %103 : f32
    %105 = vector.broadcast %104 : f32 to vector<32x128xf32>
    %106 = arith.mulf %102, %105 : vector<32x128xf32>
    %107 = vector.broadcast %86 : vector<32x1xf32> to vector<32x128xf32>
    %108 = arith.mulf %106, %107 : vector<32x128xf32>
    %109 = vector.broadcast %87 : vector<32x1xf32> to vector<32x128xf32>
    %110 = arith.addf %108, %109 : vector<32x128xf32>
    %cst_41 = arith.constant 5.000000e-01 : f32
    %111 = vector.broadcast %cst_41 : f32 to vector<32x128xf32>
    %112 = arith.mulf %111, %110 : vector<32x128xf32>
    %cst_42 = arith.constant 0.707106769 : f32
    %113 = vector.broadcast %cst_42 : f32 to vector<32x128xf32>
    %114 = arith.mulf %110, %113 : vector<32x128xf32>
    %115 = math.absf %114 : vector<32x128xf32>
    %cst_43 = arith.constant 0.327591091 : f32
    %116 = vector.broadcast %cst_43 : f32 to vector<32x128xf32>
    %117 = arith.mulf %116, %115 : vector<32x128xf32>
    %cst_44 = arith.constant 1.000000e+00 : f32
    %118 = vector.broadcast %cst_44 : f32 to vector<32x128xf32>
    %119 = arith.addf %118, %117 : vector<32x128xf32>
    %cst_45 = arith.constant 1.000000e+00 : f32
    %120 = vector.broadcast %cst_45 : f32 to vector<32x128xf32>
    %121 = arith.divf %120, %119 : vector<32x128xf32>
    %cst_46 = arith.constant 1.06140542 : f32
    %122 = vector.broadcast %cst_46 : f32 to vector<32x128xf32>
    %123 = arith.mulf %122, %121 : vector<32x128xf32>
    %cst_47 = arith.constant -1.45315206 : f32
    %124 = vector.broadcast %cst_47 : f32 to vector<32x128xf32>
    %125 = arith.addf %123, %124 : vector<32x128xf32>
    %126 = arith.mulf %125, %121 : vector<32x128xf32>
    %cst_48 = arith.constant 1.42141378 : f32
    %127 = vector.broadcast %cst_48 : f32 to vector<32x128xf32>
    %128 = arith.addf %126, %127 : vector<32x128xf32>
    %129 = arith.mulf %128, %121 : vector<32x128xf32>
    %cst_49 = arith.constant -0.284496725 : f32
    %130 = vector.broadcast %cst_49 : f32 to vector<32x128xf32>
    %131 = arith.addf %129, %130 : vector<32x128xf32>
    %132 = arith.mulf %131, %121 : vector<32x128xf32>
    %cst_50 = arith.constant 0.254829586 : f32
    %133 = vector.broadcast %cst_50 : f32 to vector<32x128xf32>
    %134 = arith.addf %132, %133 : vector<32x128xf32>
    %135 = arith.mulf %134, %121 : vector<32x128xf32>
    %cst_51 = arith.constant 0.000000e+00 : f32
    %136 = vector.broadcast %cst_51 : f32 to vector<32x128xf32>
    %137 = arith.subf %136, %115 : vector<32x128xf32>
    %138 = arith.mulf %137, %115 : vector<32x128xf32>
    %139 = math.exp %138 : vector<32x128xf32>
    %140 = arith.mulf %135, %139 : vector<32x128xf32>
    %cst_52 = arith.constant 1.000000e+00 : f32
    %141 = vector.broadcast %cst_52 : f32 to vector<32x128xf32>
    %142 = arith.subf %141, %140 : vector<32x128xf32>
    %cst_53 = arith.constant 0.000000e+00 : f32
    %143 = vector.broadcast %cst_53 : f32 to vector<32x128xf32>
    %144 = arith.cmpf oge, %114, %143 : vector<32x128xf32>
    %cst_54 = arith.constant 0.000000e+00 : f32
    %145 = vector.broadcast %cst_54 : f32 to vector<32x128xf32>
    %146 = arith.subf %145, %142 : vector<32x128xf32>
    %147 = arith.select %144, %142, %146 : vector<32x128xi1>, vector<32x128xf32>
    %cst_55 = arith.constant 1.000000e+00 : f32
    %148 = vector.broadcast %cst_55 : f32 to vector<32x128xf32>
    %149 = arith.addf %148, %147 : vector<32x128xf32>
    %150 = arith.mulf %112, %149 : vector<32x128xf32>
    %cst_56 = arith.constant 0.000000e+00 : f32
    %151 = vector.broadcast %cst_56 : f32 to vector<32x1xf32>
    %152 = tpu.concatenate %151, %84, %151 in 1 : vector<32x1xf32>, vector<32x128xf32>, vector<32x1xf32> -> vector<32x130xf32>
    %153 = vector.extract_strided_slice %152 {offsets = [0, 0], sizes = [32, 128], strides = [1, 1]} : vector<32x130xf32> to vector<32x128xf32>
    %154 = vector.extract_strided_slice %152 {offsets = [0, 1], sizes = [32, 128], strides = [1, 1]} : vector<32x130xf32> to vector<32x128xf32>
    %155 = vector.extract_strided_slice %152 {offsets = [0, 2], sizes = [32, 128], strides = [1, 1]} : vector<32x130xf32> to vector<32x128xf32>
    %156 = tpu.concatenate %153, %154, %155 in 0 : vector<32x128xf32>, vector<32x128xf32>, vector<32x128xf32> -> vector<96x128xf32>
    %cst_57 = arith.constant 0.000000e+00 : f32
    %157 = vector.broadcast %cst_57 : f32 to vector<32x1xf32>
    %158 = tpu.concatenate %157, %150, %157 in 1 : vector<32x1xf32>, vector<32x128xf32>, vector<32x1xf32> -> vector<32x130xf32>
    %159 = vector.extract_strided_slice %158 {offsets = [0, 0], sizes = [32, 128], strides = [1, 1]} : vector<32x130xf32> to vector<32x128xf32>
    %160 = vector.extract_strided_slice %158 {offsets = [0, 1], sizes = [32, 128], strides = [1, 1]} : vector<32x130xf32> to vector<32x128xf32>
    %161 = vector.extract_strided_slice %158 {offsets = [0, 2], sizes = [32, 128], strides = [1, 1]} : vector<32x130xf32> to vector<32x128xf32>
    %162 = tpu.concatenate %159, %160, %161 in 0 : vector<32x128xf32>, vector<32x128xf32>, vector<32x128xf32> -> vector<96x128xf32>
    %163 = tpu.concatenate %156, %162 in 1 : vector<96x128xf32>, vector<96x128xf32> -> vector<96x256xf32>
    %c0_58 = arith.constant 0 : index
    %c0_59 = arith.constant 0 : index
    %164 = vector.load %arg4[%c0_58, %c0_59] : memref<16x96xf32, #tpu.memory_space<vmem>>, vector<16x96xf32>
    %cst_60 = arith.constant dense<0.000000e+00> : vector<16x256xf32>
    %165 = tpu.matmul %164, %163, %cst_60 {dimension_numbers = #tpu.dot_dimension_numbers<[1], [0], [0], [1], [0, 0, 1, 1], [], []>} : vector<16x96xf32>, vector<96x256xf32>, vector<16x256xf32> -> vector<16x256xf32>
    %166 = vector.extract_strided_slice %165 {offsets = [0, 0], sizes = [16, 128], strides = [1, 1]} : vector<16x256xf32> to vector<16x128xf32>
    %c0_61 = arith.constant 0 : index
    %c0_62 = arith.constant 0 : index
    %167 = vector.load %arg5[%c0_61, %c0_62] : memref<16x1xf32, #tpu.memory_space<vmem>>, vector<16x1xf32>
    %c0_63 = arith.constant 0 : index
    %c0_64 = arith.constant 0 : index
    %168 = vector.load %arg6[%c0_63, %c0_64] : memref<16x1xf32, #tpu.memory_space<vmem>>, vector<16x1xf32>
    %169 = vector.shape_cast %166 : vector<16x128xf32> to vector<1x16x128xf32>
    %cst_65 = arith.constant dense<0.000000e+00> : vector<1xf32>
    %170 = vector.multi_reduction <add>, %169, %cst_65 [1, 2] : vector<1x16x128xf32> to vector<1xf32>
    %171 = vector.shape_cast %170 : vector<1xf32> to vector<1x1x1xf32>
    %172 = vector.extract %171[0, 0, 0] : f32 from vector<1x1x1xf32>
    %cst_66 = arith.constant 2.048000e+03 : f32
    %173 = arith.divf %172, %cst_66 : f32
    %174 = vector.broadcast %173 : f32 to vector<16x128xf32>
    %175 = arith.subf %166, %174 : vector<16x128xf32>
    %176 = arith.mulf %175, %175 : vector<16x128xf32>
    %177 = vector.shape_cast %176 : vector<16x128xf32> to vector<1x16x128xf32>
    %cst_67 = arith.constant dense<0.000000e+00> : vector<1xf32>
    %178 = vector.multi_reduction <add>, %177, %cst_67 [1, 2] : vector<1x16x128xf32> to vector<1xf32>
    %179 = vector.shape_cast %178 : vector<1xf32> to vector<1x1x1xf32>
    %180 = vector.extract %179[0, 0, 0] : f32 from vector<1x1x1xf32>
    %cst_68 = arith.constant 2.048000e+03 : f32
    %181 = arith.divf %180, %cst_68 : f32
    %182 = vector.broadcast %173 : f32 to vector<16x128xf32>
    %183 = arith.subf %166, %182 : vector<16x128xf32>
    %cst_69 = arith.constant 9.99999974E-6 : f32
    %184 = arith.addf %181, %cst_69 : f32
    %185 = math.rsqrt %184 : f32
    %186 = vector.broadcast %185 : f32 to vector<16x128xf32>
    %187 = arith.mulf %183, %186 : vector<16x128xf32>
    %188 = vector.broadcast %167 : vector<16x1xf32> to vector<16x128xf32>
    %189 = arith.mulf %187, %188 : vector<16x128xf32>
    %190 = vector.broadcast %168 : vector<16x1xf32> to vector<16x128xf32>
    %191 = arith.addf %189, %190 : vector<16x128xf32>
    %c0_70 = arith.constant 0 : index
    %c0_71 = arith.constant 0 : index
    %c0_72 = arith.constant 0 : index
    %192 = vector.load %arg7[%c0_70, %c0_71, %c0_72] : memref<2x16x128xf32, #tpu.memory_space<vmem>>, vector<1x16x128xf32>
    %193 = vector.shape_cast %192 : vector<1x16x128xf32> to vector<16x128xf32>
    %194 = vector.shape_cast %191 : vector<16x128xf32> to vector<1x16x128xf32>
    tpu.vector_store %arg7[%c0_70, %c0_71, %c0_72], %194 {strides = array<i32>} : memref<2x16x128xf32, #tpu.memory_space<vmem>>, vector<1x16x128xf32>,
    %195 = vector.extract_strided_slice %165 {offsets = [0, 128], sizes = [16, 128], strides = [1, 1]} : vector<16x256xf32> to vector<16x128xf32>
    %c0_73 = arith.constant 0 : index
    %c0_74 = arith.constant 0 : index
    %196 = vector.load %arg5[%c0_73, %c0_74] : memref<16x1xf32, #tpu.memory_space<vmem>>, vector<16x1xf32>
    %c0_75 = arith.constant 0 : index
    %c0_76 = arith.constant 0 : index
    %197 = vector.load %arg6[%c0_75, %c0_76] : memref<16x1xf32, #tpu.memory_space<vmem>>, vector<16x1xf32>
    %198 = vector.shape_cast %195 : vector<16x128xf32> to vector<1x16x128xf32>
    %cst_77 = arith.constant dense<0.000000e+00> : vector<1xf32>
    %199 = vector.multi_reduction <add>, %198, %cst_77 [1, 2] : vector<1x16x128xf32> to vector<1xf32>
    %200 = vector.shape_cast %199 : vector<1xf32> to vector<1x1x1xf32>
    %201 = vector.extract %200[0, 0, 0] : f32 from vector<1x1x1xf32>
    %cst_78 = arith.constant 2.048000e+03 : f32
    %202 = arith.divf %201, %cst_78 : f32
    %203 = vector.broadcast %202 : f32 to vector<16x128xf32>
    %204 = arith.subf %195, %203 : vector<16x128xf32>
    %205 = arith.mulf %204, %204 : vector<16x128xf32>
    %206 = vector.shape_cast %205 : vector<16x128xf32> to vector<1x16x128xf32>
    %cst_79 = arith.constant dense<0.000000e+00> : vector<1xf32>
    %207 = vector.multi_reduction <add>, %206, %cst_79 [1, 2] : vector<1x16x128xf32> to vector<1xf32>
    %208 = vector.shape_cast %207 : vector<1xf32> to vector<1x1x1xf32>
    %209 = vector.extract %208[0, 0, 0] : f32 from vector<1x1x1xf32>
    %cst_80 = arith.constant 2.048000e+03 : f32
    %210 = arith.divf %209, %cst_80 : f32
    %211 = vector.broadcast %202 : f32 to vector<16x128xf32>
    %212 = arith.subf %195, %211 : vector<16x128xf32>
    %cst_81 = arith.constant 9.99999974E-6 : f32
    %213 = arith.addf %210, %cst_81 : f32
    %214 = math.rsqrt %213 : f32
    %215 = vector.broadcast %214 : f32 to vector<16x128xf32>
    %216 = arith.mulf %212, %215 : vector<16x128xf32>
    %217 = vector.broadcast %196 : vector<16x1xf32> to vector<16x128xf32>
    %218 = arith.mulf %216, %217 : vector<16x128xf32>
    %219 = vector.broadcast %197 : vector<16x1xf32> to vector<16x128xf32>
    %220 = arith.addf %218, %219 : vector<16x128xf32>
    %c1_82 = arith.constant 1 : index
    %c0_83 = arith.constant 0 : index
    %c0_84 = arith.constant 0 : index
    %221 = vector.load %arg7[%c1_82, %c0_83, %c0_84] : memref<2x16x128xf32, #tpu.memory_space<vmem>>, vector<1x16x128xf32>
    %222 = vector.shape_cast %221 : vector<1x16x128xf32> to vector<16x128xf32>
    %223 = vector.shape_cast %220 : vector<16x128xf32> to vector<1x16x128xf32>
    tpu.vector_store %arg7[%c1_82, %c0_83, %c0_84], %223 {strides = array<i32>} : memref<2x16x128xf32, #tpu.memory_space<vmem>>, vector<1x16x128xf32>,
    return
  }
}

</mosaic_0001>

<llo_original>
// kernel: double_conv_pallas.1
$region0: #{double_conv_pallas.1}
  #allocation0 [shape = 'u32[]', space=smem, size = 0x4, offset = 0x4, fixed_abs, tag = 'smem constant byte address 0x4 - core index']
  #allocation1 [shape = 'u32[144,128]{1,0:T(1,128)}', space=vmem, size = 0x12000, scoped, tag = 'internal scratch']
  %s0 = inlined_call_operand.vmem [shape: f32[2,16,128], index: 0, kind: input, shape index: {}]
  %s1 = inlined_call_operand.vmem [shape: f32[32,48], index: 1, kind: input, shape index: {}]
  %s2 = inlined_call_operand.vmem [shape: f32[32,1], index: 2, kind: input, shape index: {}]
  %s3 = inlined_call_operand.vmem [shape: f32[32,1], index: 3, kind: input, shape index: {}]
  %s4 = inlined_call_operand.vmem [shape: f32[16,96], index: 4, kind: input, shape index: {}]
  %s5 = inlined_call_operand.vmem [shape: f32[16,1], index: 5, kind: input, shape index: {}]
  %s6 = inlined_call_operand.vmem [shape: f32[16,1], index: 6, kind: input, shape index: {}]
  %s7 = inlined_call_operand.hbm [shape: f32[2,16,128], index: 7, kind: output, shape index: {}]
  %s8 = sld [smem:[#allocation0]]
  $region38: #{double_conv_pallas.1} parent=0
    _
  %s10 = ssub.s32 1, %s8
  %s11 = scalar_select 0, %s10, %s8
  $region1: #{double_conv_pallas.1} parent=0
    #allocation2 [shape = 'u8[16384]{0}', space=vmem, size = 0x4000, scoped, tag = 'output window, operand 0, single buffered']
    #allocation3 [shape = 's32[1]{0}', space=sflag, size = 0x4, scoped, tag = 'scoped memory for double_conv_pallas.1']
    %12 = vsyncpa [#allocation3], 0
    // Predicated region
    $region2: #{double_conv_pallas.1} parent=1 // pred_check
      _
    $region3: #{double_conv_pallas.1} parent=1 // pred_check_branch
      %14 = sbr.rel (0) target = $region5
    $region4: #{double_conv_pallas.1} parent=1 // pred_region
      _
    $region5: #{double_conv_pallas.1} parent=1 // pred_fallthru
      _
    // Predicated region
    $region6: #{double_conv_pallas.1} parent=1 // pred_check
      _
    $region7: #{double_conv_pallas.1} parent=1 // pred_check_branch
      %16 = sbr.rel (0) target = $region9
    $region8: #{double_conv_pallas.1} parent=1 // pred_region
      _
    $region9: #{double_conv_pallas.1} parent=1 // pred_fallthru
      _
    // Predicated region
    $region10: #{double_conv_pallas.1} parent=1 // pred_check
      _
    $region11: #{double_conv_pallas.1} parent=1 // pred_check_branch
      %18 = sbr.rel (0) target = $region13
    $region12: #{double_conv_pallas.1} parent=1 // pred_region
      _
    $region13: #{double_conv_pallas.1} parent=1 // pred_fallthru
      _
    // Predicated region
    $region14: #{double_conv_pallas.1} parent=1 // pred_check
      _
    $region15: #{double_conv_pallas.1} parent=1 // pred_check_branch
      %20 = sbr.rel (0) target = $region17
    $region16: #{double_conv_pallas.1} parent=1 // pred_region
      _
    $region17: #{double_conv_pallas.1} parent=1 // pred_fallthru
      _
    // Predicated region
    $region18: #{double_conv_pallas.1} parent=1 // pred_check
      _
    $region19: #{double_conv_pallas.1} parent=1 // pred_check_branch
      %22 = sbr.rel (0) target = $region21
    $region20: #{double_conv_pallas.1} parent=1 // pred_region
      _
    $region21: #{double_conv_pallas.1} parent=1 // pred_fallthru
      _
    // Predicated region
    $region22: #{double_conv_pallas.1} parent=1 // pred_check
      _
    $region23: #{double_conv_pallas.1} parent=1 // pred_check_branch
      %24 = sbr.rel (0) target = $region25
    $region24: #{double_conv_pallas.1} parent=1 // pred_region
      _
    $region25: #{double_conv_pallas.1} parent=1 // pred_fallthru
      _
    // Predicated region
    $region26: #{double_conv_pallas.1} parent=1 // pred_check
      _
    $region27: #{double_conv_pallas.1} parent=1 // pred_check_branch
      %26 = sbr.rel (0) target = $region29
    $region28: #{double_conv_pallas.1} parent=1 // pred_region
      _
    $region29: #{double_conv_pallas.1} parent=1 // pred_fallthru
      _
    %v27 = vld [vmem:[%s0] sm:$0xff]
    %v28 = vld [vmem:[%s0 + $0x8] sm:$0xff]
    %31 = vrot.lane.b32.xlu0 %v27, 1
    %v32 = vpop.permute.xlu0 %31
    %33 = vrot.lane.b32.xlu0 %v28, 1
    %v34 = vpop.permute.xlu0 %33
    %vm37 = vcmask 7168
    %v38 = vsel %vm37, 0.0, %v32
    %v39 = vsel %vm37, 0.0, %v34
    %v40 = vsel %vm37, %v32, 0.0
    %v41 = vsel %vm37, %v34, 0.0
    %46 = vrot.lane.b32.xlu0 %v38, 127
    %v47 = vpop.permute.xlu0 %46
    %48 = vrot.lane.b32.xlu0 %v40, 127
    %v49 = vpop.permute.xlu0 %48
    %50 = vrot.lane.b32.xlu0 %v39, 127
    %v51 = vpop.permute.xlu0 %50
    %52 = vrot.lane.b32.xlu0 %v41, 127
    %v53 = vpop.permute.xlu0 %52
    %vm54 = vcmask 1039360
    %v55 = vsel %vm54, %v47, %v49
    %v56 = vsel %vm54, %v51, %v53
    %59 = vrot.lane.b32.xlu0 %v38, 126
    %v60 = vpop.permute.xlu0 %59
    %61 = vrot.lane.b32.xlu0 %v40, 126
    %v62 = vpop.permute.xlu0 %61
    %63 = vrot.lane.b32.xlu0 %v39, 126
    %v64 = vpop.permute.xlu0 %63
    %65 = vrot.lane.b32.xlu0 %v41, 126
    %v66 = vpop.permute.xlu0 %65
    %vm67 = vcmask 1031168
    %v68 = vsel %vm67, %v60, %v62
    %v69 = vsel %vm67, %v64, %v66
    %s72 = scalar_lea.vmem %s0, 16
    %v73 = vld [vmem:[%s72] sm:$0xff]
    %v74 = vld [vmem:[%s72 + $0x8] sm:$0xff]
    %77 = vrot.lane.b32.xlu0 %v73, 1
    %v78 = vpop.permute.xlu0 %77
    %79 = vrot.lane.b32.xlu0 %v74, 1
    %v80 = vpop.permute.xlu0 %79
    %v83 = vsel %vm37, 0.0, %v78
    %v84 = vsel %vm37, 0.0, %v80
    %v85 = vsel %vm37, %v78, 0.0
    %v86 = vsel %vm37, %v80, 0.0
    %91 = vrot.lane.b32.xlu0 %v83, 127
    %v92 = vpop.permute.xlu0 %91
    %93 = vrot.lane.b32.xlu0 %v85, 127
    %v94 = vpop.permute.xlu0 %93
    %95 = vrot.lane.b32.xlu0 %v84, 127
    %v96 = vpop.permute.xlu0 %95
    %97 = vrot.lane.b32.xlu0 %v86, 127
    %v98 = vpop.permute.xlu0 %97
    %v99 = vsel %vm54, %v92, %v94
    %v100 = vsel %vm54, %v96, %v98
    %103 = vrot.lane.b32.xlu0 %v83, 126
    %v104 = vpop.permute.xlu0 %103
    %105 = vrot.lane.b32.xlu0 %v85, 126
    %v106 = vpop.permute.xlu0 %105
    %107 = vrot.lane.b32.xlu0 %v84, 126
    %v108 = vpop.permute.xlu0 %107
    %109 = vrot.lane.b32.xlu0 %v86, 126
    %v110 = vpop.permute.xlu0 %109
    %v111 = vsel %vm67, %v104, %v106
    %v112 = vsel %vm67, %v108, %v110
    %v115 = vld [vmem:[%s1] sm:$0xff]
    %v116 = vld [vmem:[%s1 + $0x8] sm:$0xff]
    %v117 = vld [vmem:[%s1 + $0x10] sm:$0xff]
    %v118 = vld [vmem:[%s1 + $0x18] sm:$0xff]
    %vm119 = vcmask 392192
    %v121 = vsel %vm119, %v115, 0
    %v124 = vsel %vm119, %v116, 0
    %v127 = vsel %vm119, %v117, 0
    %v130 = vsel %vm119, %v118, 0
    %132 = vmatprep.subr.mxu0 0.0
    %133 = vmatpush1.msra.mxu0 0.0
    %134 = vmatprep.subr.mxu0 0.0
    %135 = vmatpush1.msra.mxu0 0.0
    %136 = vmatprep.subr.mxu0 0.0
    %137 = vmatpush1.msra.mxu0 0.0
    %138 = vmatprep.subr.mxu0 0.0
    %139 = vmatpush1.msra.mxu0 0.0
    %140 = vmatprep.subr.mxu0 0.0
    %141 = vmatpush1.msra.mxu0 0.0
    %142 = vmatprep.subr.mxu0 0.0
    %143 = vmatpush1.msra.mxu0 0.0
    %144 = vmatprep.subr.mxu0 0.0
    %145 = vmatpush1.msra.mxu0 0.0
    %146 = vmatprep.subr.mxu0 0.0
    %147 = vmatpush1.msra.mxu0 0.0
    %148 = vmatprep.subr.mxu0 0.0
    %149 = vmatpush1.msra.mxu0 0.0
    %150 = vmatprep.subr.mxu0 0.0
    %151 = vmatpush1.msra.mxu0 0.0
    %152 = vmatprep.subr.mxu0 %v112
    %153 = vmatpush1.msra.mxu0 %v69
    %154 = vmatprep.subr.mxu0 %v111
    %155 = vmatpush1.msra.mxu0 %v68
    %156 = vmatprep.subr.mxu0 %v100
    %157 = vmatpush1.msra.mxu0 %v56
    %158 = vmatprep.subr.mxu0 %v99
    %159 = vmatpush1.msra.mxu0 %v55
    %160 = vmatprep.subr.mxu0 %v84
    %161 = vmatpush1.msra.mxu0 %v39
    %162 = vmatprep.subr.mxu0 %v83
    %163 = vmatpush1.msra.mxu0 %v38
    %164 = vmatprep.subr.mxu0 0.0
    %165 = vmatpush2.msra.mxu0 0.0
    %166 = vmatprep.subr.mxu0 0.0
    %167 = vmatpush2.msra.mxu0 0.0
    %168 = vmatprep.subr.mxu0 0.0
    %169 = vmatpush2.msra.mxu0 0.0
    %170 = vmatprep.subr.mxu0 0.0
    %171 = vmatpush2.msra.mxu0 0.0
    %172 = vmatprep.subr.mxu0 0.0
    %173 = vmatpush2.msra.mxu0 0.0
    %174 = vmatprep.subr.mxu0 0.0
    %175 = vmatpush2.msra.mxu0 0.0
    %176 = vmatprep.subr.mxu0 0.0
    %177 = vmatpush2.msra.mxu0 0.0
    %178 = vmatprep.subr.mxu0 0.0
    %179 = vmatpush2.msra.mxu0 0.0
    %180 = vmatprep.subr.mxu0 0.0
    %181 = vmatpush2.msra.mxu0 0.0
    %182 = vmatprep.subr.mxu0 0.0
    %183 = vmatpush2.msra.mxu0 0.0
    %184 = vmatprep.subr.mxu0 0.0
    %185 = vmatpush2.msra.mxu0 0.0
    %186 = vmatprep.subr.mxu0 0.0
    %187 = vmatpush2.msra.mxu0 0.0
    %188 = vmatprep.subr.mxu0 0.0
    %189 = vmatpush2.msra.mxu0 0.0
    %190 = vmatprep.subr.mxu0 0.0
    %191 = vmatpush2.msra.mxu0 0.0
    %192 = vmatprep.subr.mxu0 0.0
    %193 = vmatpush2.msra.mxu0 0.0
    %194 = vmatprep.subr.mxu0 0.0
    %195 = vmatpush2.msra.mxu0 0.0
    %196 = vmatprep.mubr.f32.mxu0 0.0
    %197 = vmatmul.mubr.f32.gmra.mxu0 %v121
    %v198 = vpop.f32.mrf.mxu0
    %v199 = vadd.f32 0.0, %v198
    %v200 = vpop.f32.mrf.mxu0
    %v201 = vadd.f32 0.0, %v200
    %202 = vmatprep.mubr.f32.mxu0 0.0
    %203 = vmatmul.mubr.f32.gmra.mxu0 %v124
    %v204 = vpop.f32.mrf.mxu0
    %v205 = vadd.f32 0.0, %v204
    %v206 = vpop.f32.mrf.mxu0
    %v207 = vadd.f32 0.0, %v206
    %208 = vmatprep.mubr.f32.mxu0 0.0
    %209 = vmatmul.mubr.f32.gmra.mxu0 %v127
    %v210 = vpop.f32.mrf.mxu0
    %v211 = vadd.f32 0.0, %v210
    %v212 = vpop.f32.mrf.mxu0
    %v213 = vadd.f32 0.0, %v212
    %214 = vmatprep.mubr.f32.mxu0 0.0
    %215 = vmatmul.mubr.f32.gmra.mxu0 %v130
    %v216 = vpop.f32.mrf.mxu0
    %v217 = vadd.f32 0.0, %v216
    %v218 = vpop.f32.mrf.mxu0
    %v219 = vadd.f32 0.0, %v218
    %220 = vdwg.mxu0
    %v221 = vld [vmem:[%s2] sm:$0xff]
    %v222 = vld [vmem:[%s2 + $0x8] sm:$0xff]
    %v223 = vld [vmem:[%s2 + $0x10] sm:$0xff]
    %v224 = vld [vmem:[%s2 + $0x18] sm:$0xff]
    %v225 = vld [vmem:[%s3] sm:$0xff]
    %v226 = vld [vmem:[%s3 + $0x8] sm:$0xff]
    %v227 = vld [vmem:[%s3 + $0x10] sm:$0xff]
    %v228 = vld [vmem:[%s3 + $0x18] sm:$0xff]
    %v229 = vadd.f32 %v199, %v205
    %v230 = vadd.f32 %v229, %v211
    %v231 = vadd.f32 %v230, %v217
    %232 = vadd.xlane.f32.xlu0 %v231
    %v233 = vpop.xlane.xlu0 %232
    %v234 = vrot.slane %v233, 4
    %v235 = vadd.f32 %v233, %v234
    %v236 = vrot.slane %v235, 2
    %v237 = vadd.f32 %v235, %v236
    %v238 = vrot.slane %v237, 1
    %v239 = vadd.f32 %v237, %v238
    %s240 = vtos %v239
    %v241 = vrcp.pop 4096.0
    %s242 = vtos %v241
    %s243 = smul.f32 %s240, %s242
    %v244 = vstv %s243
    %v245 = vsub.f32 %v199, %v244
    %v246 = vsub.f32 %v205, %v244
    %v247 = vsub.f32 %v211, %v244
    %v248 = vsub.f32 %v217, %v244
    %v249 = vmul.f32 %v245, %v245
    %v250 = vmul.f32 %v246, %v246
    %v251 = vmul.f32 %v247, %v247
    %v252 = vmul.f32 %v248, %v248
    %v253 = vadd.f32 %v249, %v250
    %v254 = vadd.f32 %v253, %v251
    %v255 = vadd.f32 %v254, %v252
    %256 = vadd.xlane.f32.xlu0 %v255
    %v257 = vpop.xlane.xlu0 %256
    %v258 = vrot.slane %v257, 4
    %v259 = vadd.f32 %v257, %v258
    %v260 = vrot.slane %v259, 2
    %v261 = vadd.f32 %v259, %v260
    %v262 = vrot.slane %v261, 1
    %v263 = vadd.f32 %v261, %v262
    %s264 = vtos %v263
    %v265 = vrcp.pop 4096.0
    %s266 = vtos %v265
    %s267 = smul.f32 %s264, %s266
    %s268 = sadd.f32 %s267, 1e-05
    %v269 = vstv %s268
    %v270 = vrsqrt.pop %v269
    %s271 = vtos %v270
    %v272 = vstv %s271
    %v273 = vmul.f32 %v245, %v272
    %v274 = vmul.f32 %v246, %v272
    %v275 = vmul.f32 %v247, %v272
    %v276 = vmul.f32 %v248, %v272
    %278 = vset.pattern.permute.xlu0 0
    %279 = vperm.xlu0 %278, %v221
    %v280 = vpop.permute.xlu0 %279
    %283 = vset.pattern.permute.xlu0 0
    %284 = vperm.xlu0 %283, %v222
    %v285 = vpop.permute.xlu0 %284
    %288 = vset.pattern.permute.xlu0 0
    %289 = vperm.xlu0 %288, %v223
    %v290 = vpop.permute.xlu0 %289
    %293 = vset.pattern.permute.xlu0 0
    %294 = vperm.xlu0 %293, %v224
    %v295 = vpop.permute.xlu0 %294
    %v297 = vmul.f32 %v273, %v280
    %v298 = vmul.f32 %v274, %v285
    %v299 = vmul.f32 %v275, %v290
    %v300 = vmul.f32 %v276, %v295
    %302 = vset.pattern.permute.xlu0 0
    %303 = vperm.xlu0 %302, %v225
    %v304 = vpop.permute.xlu0 %303
    %307 = vset.pattern.permute.xlu0 0
    %308 = vperm.xlu0 %307, %v226
    %v309 = vpop.permute.xlu0 %308
    %312 = vset.pattern.permute.xlu0 0
    %313 = vperm.xlu0 %312, %v227
    %v314 = vpop.permute.xlu0 %313
    %317 = vset.pattern.permute.xlu0 0
    %318 = vperm.xlu0 %317, %v228
    %v319 = vpop.permute.xlu0 %318
    %v321 = vadd.f32 %v297, %v304
    %v322 = vadd.f32 %v298, %v309
    %v323 = vadd.f32 %v299, %v314
    %v324 = vadd.f32 %v300, %v319
    %v325 = vmul.f32 %v321, 0.5
    %v326 = vmul.f32 %v322, 0.5
    %v327 = vmul.f32 %v323, 0.5
    %v328 = vmul.f32 %v324, 0.5
    %v329 = vmul.f32 %v321, 0.70710677
    %v330 = vmul.f32 %v322, 0.70710677
    %v331 = vmul.f32 %v323, 0.70710677
    %v332 = vmul.f32 %v324, 0.70710677
    %v333 = vand.u32 2147483647, %v329
    %v334 = vand.u32 2147483647, %v330
    %v335 = vand.u32 2147483647, %v331
    %v336 = vand.u32 2147483647, %v332
    %v337 = vmul.f32 %v333, 0.3275911
    %v338 = vmul.f32 %v334, 0.3275911
    %v339 = vmul.f32 %v335, 0.3275911
    %v340 = vmul.f32 %v336, 0.3275911
    %v341 = vadd.f32 %v337, 1.0
    %v342 = vadd.f32 %v338, 1.0
    %v343 = vadd.f32 %v339, 1.0
    %v344 = vadd.f32 %v340, 1.0
    %v345 = vrcp.pop %v341
    %v346 = vmul.f32 1.0, %v345
    %v347 = vrcp.pop %v342
    %v348 = vmul.f32 1.0, %v347
    %v349 = vrcp.pop %v343
    %v350 = vmul.f32 1.0, %v349
    %v351 = vrcp.pop %v344
    %v352 = vmul.f32 1.0, %v351
    %v353 = vmul.f32 %v346, 1.0614054
    %v354 = vmul.f32 %v348, 1.0614054
    %v355 = vmul.f32 %v350, 1.0614054
    %v356 = vmul.f32 %v352, 1.0614054
    %v357 = vadd.f32 %v353, -1.4531521
    %v358 = vadd.f32 %v354, -1.4531521
    %v359 = vadd.f32 %v355, -1.4531521
    %v360 = vadd.f32 %v356, -1.4531521
    %v361 = vmul.f32 %v357, %v346
    %v362 = vmul.f32 %v358, %v348
    %v363 = vmul.f32 %v359, %v350
    %v364 = vmul.f32 %v360, %v352
    %v365 = vadd.f32 %v361, 1.4214138
    %v366 = vadd.f32 %v362, 1.4214138
    %v367 = vadd.f32 %v363, 1.4214138
    %v368 = vadd.f32 %v364, 1.4214138
    %v369 = vmul.f32 %v365, %v346
    %v370 = vmul.f32 %v366, %v348
    %v371 = vmul.f32 %v367, %v350
    %v372 = vmul.f32 %v368, %v352
    %v373 = vadd.f32 %v369, -0.28449672
    %v374 = vadd.f32 %v370, -0.28449672
    %v375 = vadd.f32 %v371, -0.28449672
    %v376 = vadd.f32 %v372, -0.28449672
    %v377 = vmul.f32 %v373, %v346
    %v378 = vmul.f32 %v374, %v348
    %v379 = vmul.f32 %v375, %v350
    %v380 = vmul.f32 %v376, %v352
    %v381 = vadd.f32 %v377, 0.2548296
    %v382 = vadd.f32 %v378, 0.2548296
    %v383 = vadd.f32 %v379, 0.2548296
    %v384 = vadd.f32 %v380, 0.2548296
    %v385 = vmul.f32 %v381, %v346
    %v386 = vmul.f32 %v382, %v348
    %v387 = vmul.f32 %v383, %v350
    %v388 = vmul.f32 %v384, %v352
    %v389 = vsub.f32 0.0, %v333
    %v390 = vsub.f32 0.0, %v334
    %v391 = vsub.f32 0.0, %v335
    %v392 = vsub.f32 0.0, %v336
    %v393 = vmul.f32 %v389, %v333
    %v394 = vmul.f32 %v390, %v334
    %v395 = vmul.f32 %v391, %v335
    %v396 = vmul.f32 %v392, %v336
    %v397 = vmul.f32 %v393, 1.442695
    %v398 = vpow.pop %v397
    %v399 = vmul.f32 %v394, 1.442695
    %v400 = vpow.pop %v399
    %v401 = vmul.f32 %v395, 1.442695
    %v402 = vpow.pop %v401
    %v403 = vmul.f32 %v396, 1.442695
    %v404 = vpow.pop %v403
    %v405 = vmul.f32 %v385, %v398
    %v406 = vmul.f32 %v386, %v400
    %v407 = vmul.f32 %v387, %v402
    %v408 = vmul.f32 %v388, %v404
    %v409 = vsub.f32 1.0, %v405
    %v410 = vsub.f32 1.0, %v406
    %v411 = vsub.f32 1.0, %v407
    %v412 = vsub.f32 1.0, %v408
    %vm413 = vcmp.ge.f32.partialorder %v329, 0.0
    %vm414 = vcmp.ge.f32.partialorder %v330, 0.0
    %vm415 = vcmp.ge.f32.partialorder %v331, 0.0
    %vm416 = vcmp.ge.f32.partialorder %v332, 0.0
    %v417 = vsub.f32 0.0, %v409
    %v418 = vsub.f32 0.0, %v410
    %v419 = vsub.f32 0.0, %v411
    %v420 = vsub.f32 0.0, %v412
    %v421 = vsel %vm413, %v409, %v417
    %v422 = vsel %vm414, %v410, %v418
    %v423 = vsel %vm415, %v411, %v419
    %v424 = vsel %vm416, %v412, %v420
    %v425 = vadd.f32 %v421, 1.0
    %v426 = vadd.f32 %v422, 1.0
    %v427 = vadd.f32 %v423, 1.0
    %v428 = vadd.f32 %v424, 1.0
    %v429 = vmul.f32 %v325, %v425
    %v430 = vmul.f32 %v326, %v426
    %v431 = vmul.f32 %v327, %v427
    %v432 = vmul.f32 %v328, %v428
    %v433 = vadd.f32 %v201, %v207
    %v434 = vadd.f32 %v433, %v213
    %v435 = vadd.f32 %v434, %v219
    %436 = vadd.xlane.f32.xlu0 %v435
    %v437 = vpop.xlane.xlu0 %436
    %v438 = vrot.slane %v437, 4
    %v439 = vadd.f32 %v437, %v438
    %v440 = vrot.slane %v439, 2
    %v441 = vadd.f32 %v439, %v440
    %v442 = vrot.slane %v441, 1
    %v443 = vadd.f32 %v441, %v442
    %s444 = vtos %v443
    %v445 = vrcp.pop 4096.0
    %s446 = vtos %v445
    %s447 = smul.f32 %s444, %s446
    %v448 = vstv %s447
    %v449 = vsub.f32 %v201, %v448
    %v450 = vsub.f32 %v207, %v448
    %v451 = vsub.f32 %v213, %v448
    %v452 = vsub.f32 %v219, %v448
    %v453 = vmul.f32 %v449, %v449
    %v454 = vmul.f32 %v450, %v450
    %v455 = vmul.f32 %v451, %v451
    %v456 = vmul.f32 %v452, %v452
    %v457 = vadd.f32 %v453, %v454
    %v458 = vadd.f32 %v457, %v455
    %v459 = vadd.f32 %v458, %v456
    %460 = vadd.xlane.f32.xlu0 %v459
    %v461 = vpop.xlane.xlu0 %460
    %v462 = vrot.slane %v461, 4
    %v463 = vadd.f32 %v461, %v462
    %v464 = vrot.slane %v463, 2
    %v465 = vadd.f32 %v463, %v464
    %v466 = vrot.slane %v465, 1
    %v467 = vadd.f32 %v465, %v466
    %s468 = vtos %v467
    %v469 = vrcp.pop 4096.0
    %s470 = vtos %v469
    %s471 = smul.f32 %s468, %s470
    %s472 = sadd.f32 %s471, 1e-05
    %v473 = vstv %s472
    %v474 = vrsqrt.pop %v473
    %s475 = vtos %v474
    %v476 = vstv %s475
    %v477 = vmul.f32 %v449, %v476
    %v478 = vmul.f32 %v450, %v476
    %v479 = vmul.f32 %v451, %v476
    %v480 = vmul.f32 %v452, %v476
    %v481 = vmul.f32 %v477, %v280
    %v482 = vmul.f32 %v478, %v285
    %v483 = vmul.f32 %v479, %v290
    %v484 = vmul.f32 %v480, %v295
    %v485 = vadd.f32 %v481, %v304
    %v486 = vadd.f32 %v482, %v309
    %v487 = vadd.f32 %v483, %v314
    %v488 = vadd.f32 %v484, %v319
    %v489 = vmul.f32 %v485, 0.5
    %v490 = vmul.f32 %v486, 0.5
    %v491 = vmul.f32 %v487, 0.5
    %v492 = vmul.f32 %v488, 0.5
    %v493 = vmul.f32 %v485, 0.70710677
    %v494 = vmul.f32 %v486, 0.70710677
    %v495 = vmul.f32 %v487, 0.70710677
    %v496 = vmul.f32 %v488, 0.70710677
    %v497 = vand.u32 2147483647, %v493
    %v498 = vand.u32 2147483647, %v494
    %v499 = vand.u32 2147483647, %v495
    %v500 = vand.u32 2147483647, %v496
    %v501 = vmul.f32 %v497, 0.3275911
    %v502 = vmul.f32 %v498, 0.3275911
    %v503 = vmul.f32 %v499, 0.3275911
    %v504 = vmul.f32 %v500, 0.3275911
    %v505 = vadd.f32 %v501, 1.0
    %v506 = vadd.f32 %v502, 1.0
    %v507 = vadd.f32 %v503, 1.0
    %v508 = vadd.f32 %v504, 1.0
    %v509 = vrcp.pop %v505
    %v510 = vmul.f32 1.0, %v509
    %v511 = vrcp.pop %v506
    %v512 = vmul.f32 1.0, %v511
    %v513 = vrcp.pop %v507
    %v514 = vmul.f32 1.0, %v513
    %v515 = vrcp.pop %v508
    %v516 = vmul.f32 1.0, %v515
    %v517 = vmul.f32 %v510, 1.0614054
    %v518 = vmul.f32 %v512, 1.0614054
    %v519 = vmul.f32 %v514, 1.0614054
    %v520 = vmul.f32 %v516, 1.0614054
    %v521 = vadd.f32 %v517, -1.4531521
    %v522 = vadd.f32 %v518, -1.4531521
    %v523 = vadd.f32 %v519, -1.4531521
    %v524 = vadd.f32 %v520, -1.4531521
    %v525 = vmul.f32 %v521, %v510
    %v526 = vmul.f32 %v522, %v512
    %v527 = vmul.f32 %v523, %v514
    %v528 = vmul.f32 %v524, %v516
    %v529 = vadd.f32 %v525, 1.4214138
    %v530 = vadd.f32 %v526, 1.4214138
    %v531 = vadd.f32 %v527, 1.4214138
    %v532 = vadd.f32 %v528, 1.4214138
    %v533 = vmul.f32 %v529, %v510
    %v534 = vmul.f32 %v530, %v512
    %v535 = vmul.f32 %v531, %v514
    %v536 = vmul.f32 %v532, %v516
    %v537 = vadd.f32 %v533, -0.28449672
    %v538 = vadd.f32 %v534, -0.28449672
    %v539 = vadd.f32 %v535, -0.28449672
    %v540 = vadd.f32 %v536, -0.28449672
    %v541 = vmul.f32 %v537, %v510
    %v542 = vmul.f32 %v538, %v512
    %v543 = vmul.f32 %v539, %v514
    %v544 = vmul.f32 %v540, %v516
    %v545 = vadd.f32 %v541, 0.2548296
    %v546 = vadd.f32 %v542, 0.2548296
    %v547 = vadd.f32 %v543, 0.2548296
    %v548 = vadd.f32 %v544, 0.2548296
    %v549 = vmul.f32 %v545, %v510
    %v550 = vmul.f32 %v546, %v512
    %v551 = vmul.f32 %v547, %v514
    %v552 = vmul.f32 %v548, %v516
    %v553 = vsub.f32 0.0, %v497
    %v554 = vsub.f32 0.0, %v498
    %v555 = vsub.f32 0.0, %v499
    %v556 = vsub.f32 0.0, %v500
    %v557 = vmul.f32 %v553, %v497
    %v558 = vmul.f32 %v554, %v498
    %v559 = vmul.f32 %v555, %v499
    %v560 = vmul.f32 %v556, %v500
    %v561 = vmul.f32 %v557, 1.442695
    %v562 = vpow.pop %v561
    %v563 = vmul.f32 %v558, 1.442695
    %v564 = vpow.pop %v563
    %v565 = vmul.f32 %v559, 1.442695
    %v566 = vpow.pop %v565
    %v567 = vmul.f32 %v560, 1.442695
    %v568 = vpow.pop %v567
    %v569 = vmul.f32 %v549, %v562
    %v570 = vmul.f32 %v550, %v564
    %v571 = vmul.f32 %v551, %v566
    %v572 = vmul.f32 %v552, %v568
    %v573 = vsub.f32 1.0, %v569
    %v574 = vsub.f32 1.0, %v570
    %v575 = vsub.f32 1.0, %v571
    %v576 = vsub.f32 1.0, %v572
    %vm577 = vcmp.ge.f32.partialorder %v493, 0.0
    %vm578 = vcmp.ge.f32.partialorder %v494, 0.0
    %vm579 = vcmp.ge.f32.partialorder %v495, 0.0
    %vm580 = vcmp.ge.f32.partialorder %v496, 0.0
    %v581 = vsub.f32 0.0, %v573
    %v582 = vsub.f32 0.0, %v574
    %v583 = vsub.f32 0.0, %v575
    %v584 = vsub.f32 0.0, %v576
    %v585 = vsel %vm577, %v573, %v581
    %v586 = vsel %vm578, %v574, %v582
    %v587 = vsel %vm579, %v575, %v583
    %v588 = vsel %vm580, %v576, %v584
    %v589 = vadd.f32 %v585, 1.0
    %v590 = vadd.f32 %v586, 1.0
    %v591 = vadd.f32 %v587, 1.0
    %v592 = vadd.f32 %v588, 1.0
    %v593 = vmul.f32 %v489, %v589
    %v594 = vmul.f32 %v490, %v590
    %v595 = vmul.f32 %v491, %v591
    %v596 = vmul.f32 %v492, %v592
    %601 = vrot.lane.b32.xlu0 %v429, 1
    %v602 = vpop.permute.xlu0 %601
    %603 = vrot.lane.b32.xlu0 %v430, 1
    %v604 = vpop.permute.xlu0 %603
    %605 = vrot.lane.b32.xlu0 %v431, 1
    %v606 = vpop.permute.xlu0 %605
    %607 = vrot.lane.b32.xlu0 %v432, 1
    %v608 = vpop.permute.xlu0 %607
    %v613 = vsel %vm37, 0.0, %v602
    %v614 = vsel %vm37, 0.0, %v604
    %v615 = vsel %vm37, 0.0, %v606
    %v616 = vsel %vm37, 0.0, %v608
    %v617 = vsel %vm37, %v602, 0.0
    %v618 = vsel %vm37, %v604, 0.0
    %v619 = vsel %vm37, %v606, 0.0
    %v620 = vsel %vm37, %v608, 0.0
    %629 = vrot.lane.b32.xlu0 %v613, 127
    %v630 = vpop.permute.xlu0 %629
    %631 = vrot.lane.b32.xlu0 %v617, 127
    %v632 = vpop.permute.xlu0 %631
    %633 = vrot.lane.b32.xlu0 %v614, 127
    %v634 = vpop.permute.xlu0 %633
    %635 = vrot.lane.b32.xlu0 %v618, 127
    %v636 = vpop.permute.xlu0 %635
    %637 = vrot.lane.b32.xlu0 %v615, 127
    %v638 = vpop.permute.xlu0 %637
    %639 = vrot.lane.b32.xlu0 %v619, 127
    %v640 = vpop.permute.xlu0 %639
    %641 = vrot.lane.b32.xlu0 %v616, 127
    %v642 = vpop.permute.xlu0 %641
    %643 = vrot.lane.b32.xlu0 %v620, 127
    %v644 = vpop.permute.xlu0 %643
    %v645 = vsel %vm54, %v630, %v632
    %v646 = vsel %vm54, %v634, %v636
    %v647 = vsel %vm54, %v638, %v640
    %v648 = vsel %vm54, %v642, %v644
    %653 = vrot.lane.b32.xlu0 %v613, 126
    %v654 = vpop.permute.xlu0 %653
    %655 = vrot.lane.b32.xlu0 %v617, 126
    %v656 = vpop.permute.xlu0 %655
    %657 = vrot.lane.b32.xlu0 %v614, 126
    %v658 = vpop.permute.xlu0 %657
    %659 = vrot.lane.b32.xlu0 %v618, 126
    %v660 = vpop.permute.xlu0 %659
    %661 = vrot.lane.b32.xlu0 %v615, 126
    %v662 = vpop.permute.xlu0 %661
    %663 = vrot.lane.b32.xlu0 %v619, 126
    %v664 = vpop.permute.xlu0 %663
    %665 = vrot.lane.b32.xlu0 %v616, 126
    %v666 = vpop.permute.xlu0 %665
    %667 = vrot.lane.b32.xlu0 %v620, 126
    %v668 = vpop.permute.xlu0 %667
    %v669 = vsel %vm67, %v654, %v656
    %v670 = vsel %vm67, %v658, %v660
    %v671 = vsel %vm67, %v662, %v664
    %v672 = vsel %vm67, %v666, %v668
    %681 = vrot.lane.b32.xlu0 %v593, 1
    %v682 = vpop.permute.xlu0 %681
    %683 = vrot.lane.b32.xlu0 %v594, 1
    %v684 = vpop.permute.xlu0 %683
    %685 = vrot.lane.b32.xlu0 %v595, 1
    %v686 = vpop.permute.xlu0 %685
    %687 = vrot.lane.b32.xlu0 %v596, 1
    %v688 = vpop.permute.xlu0 %687
    %v693 = vsel %vm37, 0.0, %v682
    %v694 = vsel %vm37, 0.0, %v684
    %v695 = vsel %vm37, 0.0, %v686
    %v696 = vsel %vm37, 0.0, %v688
    %v697 = vsel %vm37, %v682, 0.0
    %v698 = vsel %vm37, %v684, 0.0
    %v699 = vsel %vm37, %v686, 0.0
    %v700 = vsel %vm37, %v688, 0.0
    %709 = vrot.lane.b32.xlu0 %v693, 127
    %v710 = vpop.permute.xlu0 %709
    %711 = vrot.lane.b32.xlu0 %v697, 127
    %v712 = vpop.permute.xlu0 %711
    %713 = vrot.lane.b32.xlu0 %v694, 127
    %v714 = vpop.permute.xlu0 %713
    %715 = vrot.lane.b32.xlu0 %v698, 127
    %v716 = vpop.permute.xlu0 %715
    %717 = vrot.lane.b32.xlu0 %v695, 127
    %v718 = vpop.permute.xlu0 %717
    %719 = vrot.lane.b32.xlu0 %v699, 127
    %v720 = vpop.permute.xlu0 %719
    %721 = vrot.lane.b32.xlu0 %v696, 127
    %v722 = vpop.permute.xlu0 %721
    %723 = vrot.lane.b32.xlu0 %v700, 127
    %v724 = vpop.permute.xlu0 %723
    %v725 = vsel %vm54, %v710, %v712
    %v726 = vsel %vm54, %v714, %v716
    %v727 = vsel %vm54, %v718, %v720
    %v728 = vsel %vm54, %v722, %v724
    %733 = vrot.lane.b32.xlu0 %v693, 126
    %v734 = vpop.permute.xlu0 %733
    %735 = vrot.lane.b32.xlu0 %v697, 126
    %v736 = vpop.permute.xlu0 %735
    %737 = vrot.lane.b32.xlu0 %v694, 126
    %v738 = vpop.permute.xlu0 %737
    %739 = vrot.lane.b32.xlu0 %v698, 126
    %v740 = vpop.permute.xlu0 %739
    %741 = vrot.lane.b32.xlu0 %v695, 126
    %v742 = vpop.permute.xlu0 %741
    %743 = vrot.lane.b32.xlu0 %v699, 126
    %v744 = vpop.permute.xlu0 %743
    %745 = vrot.lane.b32.xlu0 %v696, 126
    %v746 = vpop.permute.xlu0 %745
    %747 = vrot.lane.b32.xlu0 %v700, 126
    %v748 = vpop.permute.xlu0 %747
    %v749 = vsel %vm67, %v734, %v736
    %v750 = vsel %vm67, %v738, %v740
    %v751 = vsel %vm67, %v742, %v744
    %v752 = vsel %vm67, %v746, %v748
    %v757 = vld [vmem:[%s4] sm:$0xff]
    %v758 = vld [vmem:[%s4 + $0x8] sm:$0xff]
    %vm759 = vcmask 785408
    %v761 = vsel %vm759, %v757, 0
    %v764 = vsel %vm759, %v758, 0
    %766 = vmatprep.subr.mxu0 0.0
    %767 = vmatpush1.msra.mxu0 0.0
    %768 = vmatprep.subr.mxu0 0.0
    %769 = vmatpush1.msra.mxu0 0.0
    %770 = vmatprep.subr.mxu0 0.0
    %771 = vmatpush1.msra.mxu0 0.0
    %772 = vmatprep.subr.mxu0 0.0
    %773 = vmatpush1.msra.mxu0 0.0
    %774 = vmatprep.subr.mxu0 %v752
    %775 = vmatpush1.msra.mxu0 %v672
    %776 = vmatprep.subr.mxu0 %v751
    %777 = vmatpush1.msra.mxu0 %v671
    %778 = vmatprep.subr.mxu0 %v750
    %779 = vmatpush1.msra.mxu0 %v670
    %780 = vmatprep.subr.mxu0 %v749
    %781 = vmatpush1.msra.mxu0 %v669
    %782 = vmatprep.subr.mxu0 %v728
    %783 = vmatpush1.msra.mxu0 %v648
    %784 = vmatprep.subr.mxu0 %v727
    %785 = vmatpush1.msra.mxu0 %v647
    %786 = vmatprep.subr.mxu0 %v726
    %787 = vmatpush1.msra.mxu0 %v646
    %788 = vmatprep.subr.mxu0 %v725
    %789 = vmatpush1.msra.mxu0 %v645
    %790 = vmatprep.subr.mxu0 %v696
    %791 = vmatpush1.msra.mxu0 %v616
    %792 = vmatprep.subr.mxu0 %v695
    %793 = vmatpush1.msra.mxu0 %v615
    %794 = vmatprep.subr.mxu0 %v694
    %795 = vmatpush1.msra.mxu0 %v614
    %796 = vmatprep.subr.mxu0 %v693
    %797 = vmatpush1.msra.mxu0 %v613
    %798 = vmatprep.subr.mxu0 0.0
    %799 = vmatpush2.msra.mxu0 0.0
    %800 = vmatprep.subr.mxu0 0.0
    %801 = vmatpush2.msra.mxu0 0.0
    %802 = vmatprep.subr.mxu0 0.0
    %803 = vmatpush2.msra.mxu0 0.0
    %804 = vmatprep.subr.mxu0 0.0
    %805 = vmatpush2.msra.mxu0 0.0
    %806 = vmatprep.subr.mxu0 0.0
    %807 = vmatpush2.msra.mxu0 0.0
    %808 = vmatprep.subr.mxu0 0.0
    %809 = vmatpush2.msra.mxu0 0.0
    %810 = vmatprep.subr.mxu0 0.0
    %811 = vmatpush2.msra.mxu0 0.0
    %812 = vmatprep.subr.mxu0 0.0
    %813 = vmatpush2.msra.mxu0 0.0
    %814 = vmatprep.subr.mxu0 0.0
    %815 = vmatpush2.msra.mxu0 0.0
    %816 = vmatprep.subr.mxu0 0.0
    %817 = vmatpush2.msra.mxu0 0.0
    %818 = vmatprep.subr.mxu0 0.0
    %819 = vmatpush2.msra.mxu0 0.0
    %820 = vmatprep.subr.mxu0 0.0
    %821 = vmatpush2.msra.mxu0 0.0
    %822 = vmatprep.subr.mxu0 0.0
    %823 = vmatpush2.msra.mxu0 0.0
    %824 = vmatprep.subr.mxu0 0.0
    %825 = vmatpush2.msra.mxu0 0.0
    %826 = vmatprep.subr.mxu0 0.0
    %827 = vmatpush2.msra.mxu0 0.0
    %828 = vmatprep.subr.mxu0 0.0
    %829 = vmatpush2.msra.mxu0 0.0
    %830 = vmatprep.mubr.f32.mxu0 0.0
    %831 = vmatmul.mubr.f32.gmra.mxu0 %v761
    %v832 = vpop.f32.mrf.mxu0
    %v833 = vadd.f32 0.0, %v832
    %v834 = vpop.f32.mrf.mxu0
    %v835 = vadd.f32 0.0, %v834
    %836 = vmatprep.mubr.f32.mxu0 0.0
    %837 = vmatmul.mubr.f32.gmra.mxu0 %v764
    %v838 = vpop.f32.mrf.mxu0
    %v839 = vadd.f32 0.0, %v838
    %v840 = vpop.f32.mrf.mxu0
    %v841 = vadd.f32 0.0, %v840
    %842 = vdwg.mxu0
    %v843 = vld [vmem:[%s5] sm:$0xff]
    %v844 = vld [vmem:[%s5 + $0x8] sm:$0xff]
    %v845 = vld [vmem:[%s6] sm:$0xff]
    %v846 = vld [vmem:[%s6 + $0x8] sm:$0xff]
    %v847 = vadd.f32 %v833, %v839
    %848 = vadd.xlane.f32.xlu0 %v847
    %v849 = vpop.xlane.xlu0 %848
    %v850 = vrot.slane %v849, 4
    %v851 = vadd.f32 %v849, %v850
    %v852 = vrot.slane %v851, 2
    %v853 = vadd.f32 %v851, %v852
    %v854 = vrot.slane %v853, 1
    %v855 = vadd.f32 %v853, %v854
    %s856 = vtos %v855
    %v857 = vrcp.pop 2048.0
    %s858 = vtos %v857
    %s859 = smul.f32 %s856, %s858
    %v860 = vstv %s859
    %v861 = vsub.f32 %v833, %v860
    %v862 = vsub.f32 %v839, %v860
    %v863 = vmul.f32 %v861, %v861
    %v864 = vmul.f32 %v862, %v862
    %v865 = vadd.f32 %v863, %v864
    %866 = vadd.xlane.f32.xlu0 %v865
    %v867 = vpop.xlane.xlu0 %866
    %v868 = vrot.slane %v867, 4
    %v869 = vadd.f32 %v867, %v868
    %v870 = vrot.slane %v869, 2
    %v871 = vadd.f32 %v869, %v870
    %v872 = vrot.slane %v871, 1
    %v873 = vadd.f32 %v871, %v872
    %s874 = vtos %v873
    %v875 = vrcp.pop 2048.0
    %s876 = vtos %v875
    %s877 = smul.f32 %s874, %s876
    %s878 = sadd.f32 %s877, 1e-05
    %v879 = vstv %s878
    %v880 = vrsqrt.pop %v879
    %s881 = vtos %v880
    %v882 = vstv %s881
    %v883 = vmul.f32 %v861, %v882
    %v884 = vmul.f32 %v862, %v882
    %886 = vset.pattern.permute.xlu0 0
    %887 = vperm.xlu0 %886, %v843
    %v888 = vpop.permute.xlu0 %887
    %891 = vset.pattern.permute.xlu0 0
    %892 = vperm.xlu0 %891, %v844
    %v893 = vpop.permute.xlu0 %892
    %v895 = vmul.f32 %v883, %v888
    %v896 = vmul.f32 %v884, %v893
    %898 = vset.pattern.permute.xlu0 0
    %899 = vperm.xlu0 %898, %v845
    %v900 = vpop.permute.xlu0 %899
    %903 = vset.pattern.permute.xlu0 0
    %904 = vperm.xlu0 %903, %v846
    %v905 = vpop.permute.xlu0 %904
    %v907 = vadd.f32 %v895, %v900
    %v908 = vadd.f32 %v896, %v905
    %909 = vst [vmem:[#allocation2] sm:$0xff] %v907
    %910 = vst [vmem:[#allocation2 + $0x8] sm:$0xff] %v908
    %v911 = vld [vmem:[%s5] sm:$0xff]
    %v912 = vld [vmem:[%s5 + $0x8] sm:$0xff]
    %v913 = vld [vmem:[%s6] sm:$0xff]
    %v914 = vld [vmem:[%s6 + $0x8] sm:$0xff]
    %v915 = vadd.f32 %v835, %v841
    %916 = vadd.xlane.f32.xlu0 %v915
    %v917 = vpop.xlane.xlu0 %916
    %v918 = vrot.slane %v917, 4
    %v919 = vadd.f32 %v917, %v918
    %v920 = vrot.slane %v919, 2
    %v921 = vadd.f32 %v919, %v920
    %v922 = vrot.slane %v921, 1
    %v923 = vadd.f32 %v921, %v922
    %s924 = vtos %v923
    %v925 = vrcp.pop 2048.0
    %s926 = vtos %v925
    %s927 = smul.f32 %s924, %s926
    %v928 = vstv %s927
    %v929 = vsub.f32 %v835, %v928
    %v930 = vsub.f32 %v841, %v928
    %v931 = vmul.f32 %v929, %v929
    %v932 = vmul.f32 %v930, %v930
    %v933 = vadd.f32 %v931, %v932
    %934 = vadd.xlane.f32.xlu0 %v933
    %v935 = vpop.xlane.xlu0 %934
    %v936 = vrot.slane %v935, 4
    %v937 = vadd.f32 %v935, %v936
    %v938 = vrot.slane %v937, 2
    %v939 = vadd.f32 %v937, %v938
    %v940 = vrot.slane %v939, 1
    %v941 = vadd.f32 %v939, %v940
    %s942 = vtos %v941
    %v943 = vrcp.pop 2048.0
    %s944 = vtos %v943
    %s945 = smul.f32 %s942, %s944
    %s946 = sadd.f32 %s945, 1e-05
    %v947 = vstv %s946
    %v948 = vrsqrt.pop %v947
    %s949 = vtos %v948
    %v950 = vstv %s949
    %v951 = vmul.f32 %v929, %v950
    %v952 = vmul.f32 %v930, %v950
    %954 = vset.pattern.permute.xlu0 0
    %955 = vperm.xlu0 %954, %v911
    %v956 = vpop.permute.xlu0 %955
    %959 = vset.pattern.permute.xlu0 0
    %960 = vperm.xlu0 %959, %v912
    %v961 = vpop.permute.xlu0 %960
    %v963 = vmul.f32 %v951, %v956
    %v964 = vmul.f32 %v952, %v961
    %966 = vset.pattern.permute.xlu0 0
    %967 = vperm.xlu0 %966, %v913
    %v968 = vpop.permute.xlu0 %967
    %971 = vset.pattern.permute.xlu0 0
    %972 = vperm.xlu0 %971, %v914
    %v973 = vpop.permute.xlu0 %972
    %v975 = vadd.f32 %v963, %v968
    %v976 = vadd.f32 %v964, %v973
    %s977 = scalar_lea.vmem [#allocation2], 16
    %978 = vst [vmem:[%s977] sm:$0xff] %v975
    %979 = vst [vmem:[%s977 + $0x8] sm:$0xff] %v976
    // Predicated region
    $region30: #{double_conv_pallas.1} parent=1 // pred_check
      _
    $region31: #{double_conv_pallas.1} parent=1 // pred_check_branch
      %981 = sbr.rel (0) target = $region33
    $region32: #{double_conv_pallas.1} parent=1 // pred_region
      %s983 = ssub.s32 512, 512
      %984 = vsyncadd [#allocation3], %s983
      %s985 = sshll.u32 [#allocation2], 4
      %s986 = int_to_ptr.vmem [resolvable:$true] %s985
      %991 = dma.vmem_to_hbm [thread:$0]  %s986, 512, %s7, [#allocation3], 128, 128, 8
    $region33: #{double_conv_pallas.1} parent=1 // pred_fallthru
      _
    // Predicated region
    $region34: #{double_conv_pallas.1} parent=1 // pred_check
      _
    $region35: #{double_conv_pallas.1} parent=1 // pred_check_branch
      %993 = sbr.rel (0) target = $region37
    $region36: #{double_conv_pallas.1} parent=1 // pred_region
      %994 = dma.done [#allocation3], 512
    $region37: #{double_conv_pallas.1} parent=1 // pred_fallthru
      _
    %995 = vsyncpa [#allocation3], 1

</llo_original>
